<compile_context>
chip_gen: v6e
topology: v6e:2x2x1
jax: 0.10.0
libtpu: 0.0.40
codegen_flags: <defaults>
</compile_context>

<pallas_src>
import jax
import jax.numpy as jnp
from jax.experimental import pallas as pl
from jax.experimental.pallas import tpu as pltpu


def _scale_kernel(factor_ref, x_ref, o_ref):
    # factor_ref: SMEM (1,) f32, already resolved (1.0 when unfitted).
    # Multiply promotes to f32 (matches torch promotion), single cast on store.
    o_ref[...] = (x_ref[...] * factor_ref[0]).astype(o_ref.dtype)


_SMALL_BYTES = 4 << 20       # whole-array single block below this (in+out <= 8 MiB VMEM)
_BLOCK_BYTES = 2 << 20       # default tile bytes (512 x 1024 f32)
_BLOCK_BYTES_BIG = 4 << 20   # tile bytes for very large arrays
_BIG_BYTES = 64 << 20
_MAX_COLS = 2048             # lane-dense slab width cap (multiple of 128)


def _cost(elems, itemsize):
    return pl.CostEstimate(
        flops=elems, transcendentals=0, bytes_accessed=2 * elems * itemsize
    )


def _lane_dense_cols(total):
    """Widest cols in [128, _MAX_COLS] (multiple of 128) dividing total, or None."""
    if total % 128 != 0:
        return None
    cols = 128
    while cols * 2 <= _MAX_COLS and total % (cols * 2) == 0:
        cols *= 2
    return cols


def _multi_tensorcore():
    """True on chips with >1 TensorCore sharing the parallel grid (v7x/v5p/v4)."""
    try:
        kind = jax.devices()[0].device_kind.lower()
        return any(tag in kind for tag in ("v7", "v5p", "v4"))
    except Exception:
        return False


def scale_factor_forward(x, scale_factor):
    """Pallas implementation of ScaleFactor.forward(x).

    x:            any-shape float array (e.g. NCHW activations).
    scale_factor: scalar float / 0-d array (module parameter; 0.0 = unfitted).
    """
    orig_shape = x.shape
    dtype = x.dtype
    total = int(x.size)
    itemsize = jnp.dtype(dtype).itemsize

    if total == 0:
        return x

    # ---- static fast path: concrete scale known at trace time --------------
    try:
        sval = float(scale_factor)
    except Exception:  # traced value (under jit) -> resolve inside XLA below
        sval = None
    if sval is not None and (sval == 0.0 or sval == 1.0):
        # unfitted (identity) or multiply-by-one: no HBM pass at all
        return x

    if sval is not None:
        factor = jnp.full((1,), sval, dtype=jnp.float32)
    else:
        s = jnp.asarray(scale_factor, dtype=jnp.float32).reshape(())
        factor = jnp.where(s != 0.0, s, jnp.float32(1.0)).reshape((1,))

    cols = _lane_dense_cols(total)

    # ---- small-input fast path: one whole-array block, no grid -------------
    if total * itemsize <= _SMALL_BYTES:
        # Lane-dense 2D view when possible (metadata-only reshape); otherwise
        # the raw N-D whole-array block (legal, rare, small).
        x_in = x.reshape(total // cols, cols) if cols is not None else x
        out = pl.pallas_call(
            _scale_kernel,
            out_shape=jax.ShapeDtypeStruct(x_in.shape, dtype),
            in_specs=[
                pl.BlockSpec(memory_space=pltpu.MemorySpace.SMEM),   # factor
                pl.BlockSpec(memory_space=pltpu.MemorySpace.VMEM),   # x (whole)
            ],
            out_specs=pl.BlockSpec(memory_space=pltpu.MemorySpace.VMEM),
            cost_estimate=_cost(total, itemsize),
        )(factor, x_in)
        return out.reshape(orig_shape)

    # ---- large-input tiled path: lane-dense (rows, cols) slab --------------
    padded = False
    if cols is None:
        # Rare: total not a multiple of 128. Pad only to 128-lane granularity
        # (< 512 B of pad for f32), never to a tile multiple.
        cols = 128
        rows = pl.cdiv(total, cols)
        flat = jnp.pad(x.reshape(-1), (0, rows * cols - total))
        x2d = flat.reshape(rows, cols)
        padded = True
        # TODO(synk): the pad + post-slice still cost one extra HBM pass each;
        # an in-kernel masked tail store would remove them for unaligned totals.
    else:
        rows = total // cols
        x2d = x.reshape(rows, cols)  # metadata-only

    processed = rows * cols
    total_bytes = processed * itemsize
    block_bytes = _BLOCK_BYTES_BIG if total_bytes >= _BIG_BYTES else _BLOCK_BYTES

    tile_rows = max(8, (block_bytes // (cols * itemsize)) // 8 * 8)
    tile_rows = min(tile_rows, rows)

    # On multi-TensorCore chips make sure each core gets >=2 pipelined steps;
    # on single-core v5e/v6e keep the biggest tile (no shrinking).
    if _multi_tensorcore() and pl.cdiv(rows, tile_rows) < 4:
        tr = max(128, ((pl.cdiv(rows, 4) + 7) // 8) * 8)
        tile_rows = min(tile_rows, tr)

    grid = (pl.cdiv(rows, tile_rows),)  # ragged last block handled by masking

    out2d = pl.pallas_call(
        _scale_kernel,
        out_shape=jax.ShapeDtypeStruct((rows, cols), dtype),
        grid_spec=pltpu.PrefetchScalarGridSpec(
            num_scalar_prefetch=0,
            grid=grid,
            in_specs=[
                pl.BlockSpec(memory_space=pltpu.MemorySpace.SMEM),     # factor
                pl.BlockSpec((tile_rows, cols), lambda i: (i, 0)),     # x tile
            ],
            out_specs=pl.BlockSpec((tile_rows, cols), lambda i: (i, 0)),
        ),
        compiler_params=pltpu.CompilerParams(
            dimension_semantics=("parallel",),
            vmem_limit_bytes=32 << 20,
        ),
        cost_estimate=_cost(processed, itemsize),
    )(factor, x2d)

    if padded:
        return out2d.reshape(-1)[:total].reshape(orig_shape)
    return out2d.reshape(orig_shape)


if __name__ == "__main__":
    key = jax.random.PRNGKey(0)
    k1, k2, k3 = jax.random.split(key, 3)

    # NCHW activation, consistent with typical ScaleFactor usage.
    x = jax.random.normal(k1, (2, 4, 16, 16), dtype=jnp.float32)
    scale_unfitted = 0.0
    scale_fitted = 0.4375  # deterministic synthetic fitted value

    # 1) unfitted module, concrete scale -> static identity fast path
    y0 = jax.block_until_ready(scale_factor_forward(x, scale_unfitted))
    assert jnp.array_equal(y0, x), "unfitted ScaleFactor must be identity"

    # 2) fitted module, small lane-dense single-block path
    y1 = jax.block_until_ready(scale_factor_forward(x, jnp.float32(scale_fitted)))
    assert jnp.allclose(y1, x * scale_fitted, rtol=1e-6, atol=1e-6), \
        "fitted ScaleFactor must scale by scale_factor"

    # 3) traced (jitted) zero scale -> in-kernel unfitted resolve, still identity
    y2 = jax.block_until_ready(jax.jit(scale_factor_forward)(x, jnp.float32(0.0)))
    assert jnp.allclose(y2, x), "traced unfitted scale must be identity"

    # 4) small, 128-unaligned total -> whole N-D block fallback
    x_odd = jax.random.normal(k2, (2, 3, 5, 7), dtype=jnp.float32)
    y3 = jax.block_until_ready(scale_factor_forward(x_odd, scale_fitted))
    assert jnp.allclose(y3, x_odd * scale_fitted, rtol=1e-6, atol=1e-6)

    # 5) large aligned activation -> tiled lane-dense path, no pad / no slice
    x_big = jax.random.normal(k3, (8, 16, 128, 128), dtype=jnp.float32)  # 8 MiB
    y4 = jax.block_until_ready(scale_factor_forward(x_big, scale_fitted))
    assert y4.shape == x_big.shape
    assert jnp.allclose(y4, x_big * scale_fitted, rtol=1e-6, atol=1e-6), \
        "tiled path must scale by scale_factor"

    # 6) large 128-unaligned total -> minimal 128-lane pad + ragged last block
    x_rag = jax.random.normal(k2, (3, 5, 7, 10007), dtype=jnp.float32)
    y5 = jax.block_until_ready(scale_factor_forward(x_rag, scale_fitted))
    assert jnp.allclose(y5, x_rag * scale_fitted, rtol=1e-6, atol=1e-6), \
        "ragged tiled path must scale by scale_factor"

    # TODO(synk): _observe() / fit_() statistics accumulation is host-side
    # Python state mutation (uses .item()) with no effect on the forward
    # output, so it is intentionally not implemented in the kernel.
    print("KERNEL_OK")
</pallas_src>

<mosaic_0001>
module attributes {stable_mosaic.version = 11 : i64} {
  func.func @_scale_kernel(%arg0: memref<1xf32, #tpu.memory_space<smem>>, %arg1: memref<1x2048xf32, #tpu.memory_space<vmem>>, %arg2: memref<1x2048xf32, #tpu.memory_space<vmem>>) attributes {dimension_semantics = [], scalar_prefetch = 0 : i64, scratch_operands = 0 : i64, tpu.core_type = #tpu.core_type<tc>} {
    %c0 = arith.constant 0 : index
    %c0_0 = arith.constant 0 : index
    %0 = vector.load %arg1[%c0, %c0_0] : memref<1x2048xf32, #tpu.memory_space<vmem>>, vector<1x2048xf32>
    %c0_1 = arith.constant 0 : index
    %1 = memref.load %arg0[%c0_1] : memref<1xf32, #tpu.memory_space<smem>>
    %2 = vector.broadcast %1 : f32 to vector<1x2048xf32>
    %3 = arith.mulf %0, %2 : vector<1x2048xf32>
    %c0_2 = arith.constant 0 : index
    %c0_3 = arith.constant 0 : index
    %4 = vector.load %arg2[%c0_2, %c0_3] : memref<1x2048xf32, #tpu.memory_space<vmem>>, vector<1x2048xf32>
    tpu.vector_store %arg2[%c0_2, %c0_3], %3 {strides = array<i32>} : memref<1x2048xf32, #tpu.memory_space<vmem>>, vector<1x2048xf32>,
    return
  }
}

</mosaic_0001>

<llo_original>
// kernel: tpu_custom_call.1
$region0: #{tpu_custom_call.1}
  #allocation0 [shape = 'u32[]', space=smem, size = 0x4, offset = 0x4, fixed_abs, tag = 'smem constant byte address 0x4 - core index']
  #allocation1 [shape = 'u32[144,128]{1,0:T(1,128)}', space=vmem, size = 0x12000, scoped, tag = 'internal scratch']
  #allocation2 [shape = 'f32[1]{0:T(128)S(6)}', space=smem, size = 0x200, scoped, tag = 'scoped memory for tpu_custom_call.1']
  %s0 = inlined_call_operand.<no memory space> [shape: f32[1], index: 0, kind: input, shape index: {}]
  %s1 = inlined_call_operand.hbm [shape: f32[1,2048], index: 1, kind: input, shape index: {}]
  %s2 = inlined_call_operand.hbm [shape: f32[1,2048], index: 2, kind: output, shape index: {}]
  %s3 = sld [smem:[#allocation0]]
  $region22: #{tpu_custom_call.1} parent=0
    _
  %s5 = ssub.s32 1, %s3
  %s6 = scalar_select 0, %s5, %s3
  %7 = sst [smem:[#allocation2]] %s0
  $region1: #{tpu_custom_call.1} parent=0
    #allocation3 [shape = 'u8[8192]{0}', space=vmem, size = 0x2000, scoped, tag = 'input window, operand 1, single buffered']
    #allocation4 [shape = 's32[1]{0}', space=sflag, size = 0x4, scoped, tag = 'scoped memory for tpu_custom_call.1']
    #allocation5 [shape = 's32[1]{0}', space=sflag, size = 0x4, scoped, tag = 'scoped memory for tpu_custom_call.1']
    #allocation6 [shape = 'u8[8192]{0}', space=vmem, size = 0x2000, scoped, tag = 'output window, operand 0, single buffered']
    %8 = vsyncpa [#allocation4], 0
    %9 = vsyncpa [#allocation5], 0
    // Predicated region
    $region2: #{tpu_custom_call.1} parent=1 // pred_check
      _
    $region3: #{tpu_custom_call.1} parent=1 // pred_check_branch
      %11 = sbr.rel (0) target = $region5
    $region4: #{tpu_custom_call.1} parent=1 // pred_region
      _
    $region5: #{tpu_custom_call.1} parent=1 // pred_fallthru
      _
    // Predicated region
    $region6: #{tpu_custom_call.1} parent=1 // pred_check
      _
    $region7: #{tpu_custom_call.1} parent=1 // pred_check_branch
      %13 = sbr.rel (0) target = $region9
    $region8: #{tpu_custom_call.1} parent=1 // pred_region
      %s15 = ssub.s32 256, 256
      %16 = vsyncadd [#allocation4], %s15
      %s18 = sshll.u32 [#allocation3], 4
      %s19 = int_to_ptr.vmem [resolvable:$true] %s18
      %21 = dma.hbm_to_vmem [thread:$0]  %s1, 256, %s19, [#allocation4]
    $region9: #{tpu_custom_call.1} parent=1 // pred_fallthru
      _
    // Predicated region
    $region10: #{tpu_custom_call.1} parent=1 // pred_check
      _
    $region11: #{tpu_custom_call.1} parent=1 // pred_check_branch
      %23 = sbr.rel (0) target = $region13
    $region12: #{tpu_custom_call.1} parent=1 // pred_region
      %24 = dma.done [#allocation4], 256
    $region13: #{tpu_custom_call.1} parent=1 // pred_fallthru
      _
    %v25 = vld [vmem:[#allocation3] sm:$0xff]
    %v26 = vld [vmem:[#allocation3 + $0x8] sm:$0xff]
    %s27 = sld [smem:[#allocation2]]
    %v28 = vstv %s27
    %v29 = vmul.f32 %v25, %v28
    %v30 = vmul.f32 %v26, %v28
    %31 = vst [vmem:[#allocation6] sm:$0xff] %v29
    %32 = vst [vmem:[#allocation6 + $0x8] sm:$0xff] %v30
    // Predicated region
    $region14: #{tpu_custom_call.1} parent=1 // pred_check
      _
    $region15: #{tpu_custom_call.1} parent=1 // pred_check_branch
      %34 = sbr.rel (0) target = $region17
    $region16: #{tpu_custom_call.1} parent=1 // pred_region
      %s36 = ssub.s32 256, 256
      %37 = vsyncadd [#allocation5], %s36
      %s39 = sshll.u32 [#allocation6], 4
      %s40 = int_to_ptr.vmem [resolvable:$true] %s39
      %42 = dma.vmem_to_hbm [thread:$0]  %s40, 256, %s2, [#allocation5]
    $region17: #{tpu_custom_call.1} parent=1 // pred_fallthru
      _
    // Predicated region
    $region18: #{tpu_custom_call.1} parent=1 // pred_check
      _
    $region19: #{tpu_custom_call.1} parent=1 // pred_check_branch
      %44 = sbr.rel (0) target = $region21
    $region20: #{tpu_custom_call.1} parent=1 // pred_region
      %45 = dma.done [#allocation5], 256
    $region21: #{tpu_custom_call.1} parent=1 // pred_fallthru
      _
    %46 = vsyncpa [#allocation4], 1
    %47 = vsyncpa [#allocation5], 1

</llo_original>
